<compile_context>
chip_gen: v5e
topology: v5e:2x2
jax: 0.10.0
libtpu: 0.0.40
codegen_flags: <defaults>
</compile_context>

<pallas_src>
import jax
import jax.numpy as jnp
import numpy as np
from jax import lax
from jax.experimental import pallas as pl
from jax.experimental.pallas import tpu as pltpu


def _round_up(x, m):
    return ((x + m - 1) // m) * m


def calculate_required_padding(kernel, strides, in_height, in_width):
    k_height, k_width = kernel
    if k_height % 2 != 1 or k_width % 2 != 1:
        raise ValueError("Only kernels with odd dimension lengths are supported.")
    stride_height, stride_width = strides
    pad_left = k_width // 2
    pad_top = k_height // 2
    d_right = (in_width - 1) % stride_width
    d_bottom = (in_height - 1) % stride_height
    pad_right = k_width // 2 - d_right
    pad_bottom = k_height // 2 - d_bottom
    return pad_left, pad_right, pad_top, pad_bottom


def toric_pad_nchw(x, kernel, strides):
    """Exact JAX port of spherical/inception.py::toric_pad.forward (used only for the reference)."""
    in_height, in_width = x.shape[2], x.shape[3]
    pad_left, pad_right, pad_top, pad_bottom = calculate_required_padding(
        kernel, strides, in_height, in_width)
    if pad_top != 0:
        x = jnp.concatenate([x[:, :, -pad_top:, :], x], axis=2)
    if pad_left != 0:
        x = jnp.concatenate([x[:, :, :, -pad_left:], x], axis=3)
    if pad_bottom != 0:
        x = jnp.concatenate([x, x[:, :, pad_top:pad_top + pad_bottom, :]], axis=2)
    if pad_right != 0:
        x = jnp.concatenate([x, x[:, :, :, pad_left:pad_left + pad_right]], axis=3)
    return x


def _make_conv_bn_relu_kernel(KH, KW, Wp, Cin, TM):
    """One deep contraction per tile: in-VMEM im2col -> single MXU dot -> fused BN + ReLU epilogue."""

    def kernel(x_ref, w_ref, scale_ref, bias_ref, o_ref, col_ref):
        # x_ref:     (Cin, TW)        input window: flat padded pixels on lanes, channels on sublanes
        # w_ref:     (Cout_s, K)      weight matrix, K = KH*KW*Cin (resident)
        # scale_ref: (Cout_s, 1) f32  folded BN scale
        # bias_ref:  (Cout_s, 1) f32  folded BN bias
        # o_ref:     (Cout_s, TM)     output tile: flat NCHW pixels on lanes (lane-dense)
        # col_ref:   (K, TM)          im2col scratch (VMEM)
        for kh in range(KH):
            for kw in range(KW):
                off = kh * Wp + kw                      # static flat offset of this tap
                r0 = (kh * KW + kw) * Cin
                col_ref[r0:r0 + Cin, :] = x_ref[:, off:off + TM]
        acc = jnp.dot(w_ref[...], col_ref[...], preferred_element_type=jnp.float32)
        y = acc * scale_ref[...] + bias_ref[...]
        o_ref[...] = jnp.maximum(y, 0.0).astype(o_ref.dtype)

    return kernel


def basic_conv2d(x_nchw, weight_oihw, gamma, beta, running_mean, running_var,
                 *, stride=(1, 1), eps=1e-3):
    if isinstance(stride, int):
        stride = (stride, stride)
    N, Cin, H, W = x_nchw.shape
    Cout, Cin_w, KH, KW = weight_oihw.shape
    assert Cin == Cin_w, (Cin, Cin_w)
    if stride != (1, 1):
        raise NotImplementedError("Pallas path implemented for stride=(1,1).")

    pad_left, pad_right, pad_top, pad_bottom = calculate_required_padding(
        (KH, KW), stride, H, W)
    Hp, Wp = H + pad_top + pad_bottom, W + pad_left + pad_right
    Ho, Wo = Hp - KH + 1, Wp - KW + 1                  # == H, W for stride (1,1)

    # ---- tiling over the flat padded-pixel axis q = h*Wp + w ----
    halo = (KH - 1) * Wp + (KW - 1)                    # extra flat pixels a tile's taps reach past its base
    Mq_need = Ho * Wp                                  # flat positions kept (garbage cols sliced off after)
    TM = min(512, _round_up(Mq_need, 128))             # output tile width on lanes, multiple of 128
    nt = -(-Mq_need // TM)                             # spatial tiles per image
    TW = _round_up(TM + halo, 128)                     # input window per tile, lane-padded
    assert Mq_need <= nt * TM

    # ---- toric pad + tiling folded into ONE gather with precomputed wrap-around indices ----
    # padded flat pixel p = t*TM + j  ->  original pixel ((p//Wp - pad_top) % H, (p%Wp - pad_left) % W)
    p = np.arange(nt)[:, None] * TM + np.arange(TW)[None, :]
    idx = ((p // Wp - pad_top) % H) * W + ((p % Wp - pad_left) % W)
    idx = jnp.asarray(idx.reshape(-1), jnp.int32)
    xtiles = jnp.take(x_nchw.reshape(N, Cin, H * W), idx, axis=2)      # (N, Cin, nt*TW)

    # ---- weights -> (Cout_s, K), K = KH*KW*Cin, row order matching the im2col fill ----
    K = KH * KW * Cin
    Cout_s = _round_up(Cout, 8)
    wmat = jnp.transpose(weight_oihw, (0, 2, 3, 1)).reshape(Cout, K)
    wmat = jnp.pad(wmat, ((0, Cout_s - Cout), (0, 0))).astype(x_nchw.dtype)

    # ---- eval-mode BN folded into per-channel scale/bias (f32 epilogue) ----
    scale = (gamma / jnp.sqrt(running_var + eps)).astype(jnp.float32)
    bias = (beta - running_mean * scale).astype(jnp.float32)
    scale_p = jnp.pad(scale, (0, Cout_s - Cout)).reshape(Cout_s, 1)
    bias_p = jnp.pad(bias, (0, Cout_s - Cout)).reshape(Cout_s, 1)

    kernel = _make_conv_bn_relu_kernel(KH, KW, Wp, Cin, TM)

    # ---- VMEM budget (double-buffered in/out + resident weights + col scratch), clamped to hardware ----
    itemsize = jnp.dtype(x_nchw.dtype).itemsize
    need = (2 * _round_up(Cin, 8) * TW * itemsize          # input window, double-buffered
            + 2 * Cout_s * TM * itemsize                   # output tile, double-buffered
            + 2 * Cout_s * _round_up(K, 128) * itemsize    # weights
            + _round_up(K, 8) * TM * itemsize              # col scratch
            + 4 * 8 * 128 * 4)                             # scale/bias
    try:
        hw_vmem = int(pltpu.get_tpu_info().vmem_capacity_bytes)
    except Exception:
        hw_vmem = 64 << 20                                  # v7x per-TensorCore VMEM (smallest in fleet)
    vmem_limit = int(min(hw_vmem, max(2 * need, 32 << 20)))

    flops = 2 * N * nt * TM * K * Cout_s
    bytes_accessed = int(N * Cin * nt * TW * itemsize
                         + Cout_s * K * itemsize
                         + N * Cout_s * nt * TM * itemsize)

    out_flat = pl.pallas_call(
        kernel,
        out_shape=jax.ShapeDtypeStruct((N, Cout_s, nt * TM), x_nchw.dtype),
        grid_spec=pltpu.PrefetchScalarGridSpec(
            num_scalar_prefetch=0,
            grid=(N, nt),
            in_specs=[
                pl.BlockSpec((None, Cin, TW), lambda n, t: (n, 0, t)),      # input window per (image, tile)
                pl.BlockSpec((Cout_s, K), lambda n, t: (0, 0)),             # weights (resident)
                pl.BlockSpec((Cout_s, 1), lambda n, t: (0, 0)),             # bn scale
                pl.BlockSpec((Cout_s, 1), lambda n, t: (0, 0)),             # bn bias
            ],
            out_specs=pl.BlockSpec((None, Cout_s, TM), lambda n, t: (n, 0, t)),
            scratch_shapes=[pltpu.VMEM((K, TM), x_nchw.dtype)],
        ),
        compiler_params=pltpu.CompilerParams(
            dimension_semantics=("parallel", "parallel"),
            vmem_limit_bytes=vmem_limit,
        ),
        cost_estimate=pl.CostEstimate(flops=flops, transcendentals=0,
                                      bytes_accessed=bytes_accessed),
    )(xtiles, wmat, scale_p, bias_p)

    # ---- drop garbage columns (w >= Wo) and padded channels; already NCHW, no transpose needed ----
    out = out_flat[:, :Cout, :Ho * Wp].reshape(N, Cout, Ho, Wp)[:, :, :, :Wo]
    return out


if __name__ == "__main__":
    key = jax.random.PRNGKey(0)
    kx, kw_, kg, kb, km, kv = jax.random.split(key, 6)

    # BasicConv2d(in_channels=4, out_channels=8, kernel_size=3, stride=(1,1))
    N, Cin, H, W = 2, 4, 16, 16
    Cout, KH, KW = 8, 3, 3
    eps = 1e-3

    x = jax.random.normal(kx, (N, Cin, H, W), jnp.float32)
    weight = 0.1 * jax.random.normal(kw_, (Cout, Cin, KH, KW), jnp.float32)   # conv weight (bias=False)
    gamma = 1.0 + 0.1 * jax.random.normal(kg, (Cout,), jnp.float32)           # bn weight
    beta = 0.1 * jax.random.normal(kb, (Cout,), jnp.float32)                  # bn bias
    running_mean = 0.1 * jax.random.normal(km, (Cout,), jnp.float32)
    running_var = 0.5 + 0.5 * jnp.abs(jax.random.normal(kv, (Cout,), jnp.float32))

    run = jax.jit(lambda a, b_, c, d, e, f: basic_conv2d(a, b_, c, d, e, f,
                                                         stride=(1, 1), eps=eps))
    out = run(x, weight, gamma, beta, running_mean, running_var)
    out = jax.block_until_ready(out)

    # Pure-JAX reference: literal toric pad (concat port) + VALID conv + eval-mode BN + ReLU.
    xp_ref = toric_pad_nchw(x, (KH, KW), (1, 1))
    conv_ref = lax.conv_general_dilated(
        xp_ref, weight, window_strides=(1, 1), padding="VALID",
        dimension_numbers=("NCHW", "OIHW", "NCHW"),
        precision=lax.Precision.HIGHEST)
    s = gamma / jnp.sqrt(running_var + eps)
    b = beta - running_mean * s
    ref = jnp.maximum(conv_ref * s[None, :, None, None] + b[None, :, None, None], 0.0)

    assert out.shape == (N, Cout, H, W), out.shape
    err = float(jnp.max(jnp.abs(out - ref)))
    assert jnp.allclose(out, ref, atol=2e-3, rtol=2e-3), err
    print("KERNEL_OK")
</pallas_src>

<mosaic_0001>
module attributes {stable_mosaic.version = 11 : i64} {
  func.func @kernel(%arg0: i32, %arg1: i32, %arg2: memref<1x4x512xf32, #tpu.memory_space<vmem>>, %arg3: memref<8x36xf32, #tpu.memory_space<vmem>>, %arg4: memref<8x1xf32, #tpu.memory_space<vmem>>, %arg5: memref<8x1xf32, #tpu.memory_space<vmem>>, %arg6: memref<1x8x384xf32, #tpu.memory_space<vmem>>, %arg7: memref<36x384xf32, #tpu.memory_space<vmem>>) attributes {dimension_semantics = [#tpu.dimension_semantics<parallel>, #tpu.dimension_semantics<parallel>], iteration_bounds = array<i64: 2, 1>, scalar_prefetch = 0 : i64, scratch_operands = 1 : i64, tpu.core_type = #tpu.core_type<tc>, window_params = [{transform_indices = @transform_0, window_bounds = array<i64: 1, 4, 512>}, {pipeline_mode = #tpu.pipeline_mode<synchronous>, transform_indices = @transform_1, window_bounds = array<i64: 8, 36>}, {pipeline_mode = #tpu.pipeline_mode<synchronous>, transform_indices = @transform_2, window_bounds = array<i64: 8, 1>}, {pipeline_mode = #tpu.pipeline_mode<synchronous>, transform_indices = @transform_3, window_bounds = array<i64: 8, 1>}, {transform_indices = @transform_4, window_bounds = array<i64: 1, 8, 384>}]} {
    %c0 = arith.constant 0 : index
    %c0_0 = arith.constant 0 : index
    %c0_1 = arith.constant 0 : index
    %0 = vector.load %arg2[%c0, %c0_0, %c0_1] : memref<1x4x512xf32, #tpu.memory_space<vmem>>, vector<1x4x384xf32>
    %1 = vector.shape_cast %0 : vector<1x4x384xf32> to vector<4x384xf32>
    %c0_2 = arith.constant 0 : index
    %c0_3 = arith.constant 0 : index
    %2 = vector.load %arg7[%c0_2, %c0_3] : memref<36x384xf32, #tpu.memory_space<vmem>>, vector<4x384xf32>
    tpu.vector_store %arg7[%c0_2, %c0_3], %1 {strides = array<i32>} : memref<36x384xf32, #tpu.memory_space<vmem>>, vector<4x384xf32>,
    %c0_4 = arith.constant 0 : index
    %c0_5 = arith.constant 0 : index
    %c1 = arith.constant 1 : index
    %3 = vector.load %arg2[%c0_4, %c0_5, %c1] : memref<1x4x512xf32, #tpu.memory_space<vmem>>, vector<1x4x384xf32>
    %4 = vector.shape_cast %3 : vector<1x4x384xf32> to vector<4x384xf32>
    %c4 = arith.constant 4 : index
    %c0_6 = arith.constant 0 : index
    %5 = vector.load %arg7[%c4, %c0_6] : memref<36x384xf32, #tpu.memory_space<vmem>>, vector<4x384xf32>
    tpu.vector_store %arg7[%c4, %c0_6], %4 {strides = array<i32>} : memref<36x384xf32, #tpu.memory_space<vmem>>, vector<4x384xf32>,
    %c0_7 = arith.constant 0 : index
    %c0_8 = arith.constant 0 : index
    %c2 = arith.constant 2 : index
    %6 = vector.load %arg2[%c0_7, %c0_8, %c2] : memref<1x4x512xf32, #tpu.memory_space<vmem>>, vector<1x4x384xf32>
    %7 = vector.shape_cast %6 : vector<1x4x384xf32> to vector<4x384xf32>
    %c8 = arith.constant 8 : index
    %c0_9 = arith.constant 0 : index
    %8 = vector.load %arg7[%c8, %c0_9] : memref<36x384xf32, #tpu.memory_space<vmem>>, vector<4x384xf32>
    tpu.vector_store %arg7[%c8, %c0_9], %7 {strides = array<i32>} : memref<36x384xf32, #tpu.memory_space<vmem>>, vector<4x384xf32>,
    %c0_10 = arith.constant 0 : index
    %c0_11 = arith.constant 0 : index
    %c18 = arith.constant 18 : index
    %9 = vector.load %arg2[%c0_10, %c0_11, %c18] : memref<1x4x512xf32, #tpu.memory_space<vmem>>, vector<1x4x384xf32>
    %10 = vector.shape_cast %9 : vector<1x4x384xf32> to vector<4x384xf32>
    %c12 = arith.constant 12 : index
    %c0_12 = arith.constant 0 : index
    %11 = vector.load %arg7[%c12, %c0_12] : memref<36x384xf32, #tpu.memory_space<vmem>>, vector<4x384xf32>
    tpu.vector_store %arg7[%c12, %c0_12], %10 {strides = array<i32>} : memref<36x384xf32, #tpu.memory_space<vmem>>, vector<4x384xf32>,
    %c0_13 = arith.constant 0 : index
    %c0_14 = arith.constant 0 : index
    %c19 = arith.constant 19 : index
    %12 = vector.load %arg2[%c0_13, %c0_14, %c19] : memref<1x4x512xf32, #tpu.memory_space<vmem>>, vector<1x4x384xf32>
    %13 = vector.shape_cast %12 : vector<1x4x384xf32> to vector<4x384xf32>
    %c16 = arith.constant 16 : index
    %c0_15 = arith.constant 0 : index
    %14 = vector.load %arg7[%c16, %c0_15] : memref<36x384xf32, #tpu.memory_space<vmem>>, vector<4x384xf32>
    tpu.vector_store %arg7[%c16, %c0_15], %13 {strides = array<i32>} : memref<36x384xf32, #tpu.memory_space<vmem>>, vector<4x384xf32>,
    %c0_16 = arith.constant 0 : index
    %c0_17 = arith.constant 0 : index
    %c20 = arith.constant 20 : index
    %15 = vector.load %arg2[%c0_16, %c0_17, %c20] : memref<1x4x512xf32, #tpu.memory_space<vmem>>, vector<1x4x384xf32>
    %16 = vector.shape_cast %15 : vector<1x4x384xf32> to vector<4x384xf32>
    %c20_18 = arith.constant 20 : index
    %c0_19 = arith.constant 0 : index
    %17 = vector.load %arg7[%c20_18, %c0_19] : memref<36x384xf32, #tpu.memory_space<vmem>>, vector<4x384xf32>
    tpu.vector_store %arg7[%c20_18, %c0_19], %16 {strides = array<i32>} : memref<36x384xf32, #tpu.memory_space<vmem>>, vector<4x384xf32>,
    %c0_20 = arith.constant 0 : index
    %c0_21 = arith.constant 0 : index
    %c36 = arith.constant 36 : index
    %18 = vector.load %arg2[%c0_20, %c0_21, %c36] : memref<1x4x512xf32, #tpu.memory_space<vmem>>, vector<1x4x384xf32>
    %19 = vector.shape_cast %18 : vector<1x4x384xf32> to vector<4x384xf32>
    %c24 = arith.constant 24 : index
    %c0_22 = arith.constant 0 : index
    %20 = vector.load %arg7[%c24, %c0_22] : memref<36x384xf32, #tpu.memory_space<vmem>>, vector<4x384xf32>
    tpu.vector_store %arg7[%c24, %c0_22], %19 {strides = array<i32>} : memref<36x384xf32, #tpu.memory_space<vmem>>, vector<4x384xf32>,
    %c0_23 = arith.constant 0 : index
    %c0_24 = arith.constant 0 : index
    %c37 = arith.constant 37 : index
    %21 = vector.load %arg2[%c0_23, %c0_24, %c37] : memref<1x4x512xf32, #tpu.memory_space<vmem>>, vector<1x4x384xf32>
    %22 = vector.shape_cast %21 : vector<1x4x384xf32> to vector<4x384xf32>
    %c28 = arith.constant 28 : index
    %c0_25 = arith.constant 0 : index
    %23 = vector.load %arg7[%c28, %c0_25] : memref<36x384xf32, #tpu.memory_space<vmem>>, vector<4x384xf32>
    tpu.vector_store %arg7[%c28, %c0_25], %22 {strides = array<i32>} : memref<36x384xf32, #tpu.memory_space<vmem>>, vector<4x384xf32>,
    %c0_26 = arith.constant 0 : index
    %c0_27 = arith.constant 0 : index
    %c38 = arith.constant 38 : index
    %24 = vector.load %arg2[%c0_26, %c0_27, %c38] : memref<1x4x512xf32, #tpu.memory_space<vmem>>, vector<1x4x384xf32>
    %25 = vector.shape_cast %24 : vector<1x4x384xf32> to vector<4x384xf32>
    %c32 = arith.constant 32 : index
    %c0_28 = arith.constant 0 : index
    %26 = vector.load %arg7[%c32, %c0_28] : memref<36x384xf32, #tpu.memory_space<vmem>>, vector<4x384xf32>
    tpu.vector_store %arg7[%c32, %c0_28], %25 {strides = array<i32>} : memref<36x384xf32, #tpu.memory_space<vmem>>, vector<4x384xf32>,
    %c0_29 = arith.constant 0 : index
    %c0_30 = arith.constant 0 : index
    %27 = vector.load %arg3[%c0_29, %c0_30] : memref<8x36xf32, #tpu.memory_space<vmem>>, vector<8x36xf32>
    %c0_31 = arith.constant 0 : index
    %c0_32 = arith.constant 0 : index
    %28 = vector.load %arg7[%c0_31, %c0_32] : memref<36x384xf32, #tpu.memory_space<vmem>>, vector<36x384xf32>
    %cst = arith.constant dense<0.000000e+00> : vector<8x384xf32>
    %29 = tpu.matmul %27, %28, %cst {dimension_numbers = #tpu.dot_dimension_numbers<[1], [0], [0], [1], [0, 0, 1, 1], [], []>} : vector<8x36xf32>, vector<36x384xf32>, vector<8x384xf32> -> vector<8x384xf32>
    %c0_33 = arith.constant 0 : index
    %c0_34 = arith.constant 0 : index
    %30 = vector.load %arg4[%c0_33, %c0_34] : memref<8x1xf32, #tpu.memory_space<vmem>>, vector<8x1xf32>
    %31 = vector.broadcast %30 : vector<8x1xf32> to vector<8x384xf32>
    %32 = arith.mulf %29, %31 : vector<8x384xf32>
    %c0_35 = arith.constant 0 : index
    %c0_36 = arith.constant 0 : index
    %33 = vector.load %arg5[%c0_35, %c0_36] : memref<8x1xf32, #tpu.memory_space<vmem>>, vector<8x1xf32>
    %34 = vector.broadcast %33 : vector<8x1xf32> to vector<8x384xf32>
    %35 = arith.addf %32, %34 : vector<8x384xf32>
    %cst_37 = arith.constant 0.000000e+00 : f32
    %36 = vector.broadcast %cst_37 : f32 to vector<8x384xf32>
    %37 = arith.maximumf %35, %36 : vector<8x384xf32>
    %c0_38 = arith.constant 0 : index
    %c0_39 = arith.constant 0 : index
    %c0_40 = arith.constant 0 : index
    %38 = vector.load %arg6[%c0_38, %c0_39, %c0_40] : memref<1x8x384xf32, #tpu.memory_space<vmem>>, vector<1x8x384xf32>
    %39 = vector.shape_cast %38 : vector<1x8x384xf32> to vector<8x384xf32>
    %40 = vector.shape_cast %37 : vector<8x384xf32> to vector<1x8x384xf32>
    tpu.vector_store %arg6[%c0_38, %c0_39, %c0_40], %40 {strides = array<i32>} : memref<1x8x384xf32, #tpu.memory_space<vmem>>, vector<1x8x384xf32>,
    return
  }
  func.func @transform_0(%arg0: i32, %arg1: i32) -> (i32, i32, i32) {
    %c0_i32 = arith.constant 0 : i32
    %c0_i32_0 = arith.constant 0 : i32
    return %arg0, %c0_i32, %arg1 : i32, i32, i32
  }
  func.func @transform_1(%arg0: i32, %arg1: i32) -> (i32, i32) {
    %c0_i32 = arith.constant 0 : i32
    %c0_i32_0 = arith.constant 0 : i32
    %c0_i32_1 = arith.constant 0 : i32
    return %c0_i32, %c0_i32_0 : i32, i32
  }
  func.func @transform_2(%arg0: i32, %arg1: i32) -> (i32, i32) {
    %c0_i32 = arith.constant 0 : i32
    %c0_i32_0 = arith.constant 0 : i32
    %c0_i32_1 = arith.constant 0 : i32
    return %c0_i32, %c0_i32_0 : i32, i32
  }
  func.func @transform_3(%arg0: i32, %arg1: i32) -> (i32, i32) {
    %c0_i32 = arith.constant 0 : i32
    %c0_i32_0 = arith.constant 0 : i32
    %c0_i32_1 = arith.constant 0 : i32
    return %c0_i32, %c0_i32_0 : i32, i32
  }
  func.func @transform_4(%arg0: i32, %arg1: i32) -> (i32, i32, i32) {
    %c0_i32 = arith.constant 0 : i32
    %c0_i32_0 = arith.constant 0 : i32
    return %arg0, %c0_i32, %arg1 : i32, i32, i32
  }
}

</mosaic_0001>

<llo_original>
// kernel: _lambda_.1
$region0: #{_lambda_.1}
  #allocation0 [shape = 'u32[]', space=smem, size = 0x4, offset = 0x4, fixed_abs, tag = 'smem constant byte address 0x4 - core index']
  #allocation1 [shape = 'u32[72,128]{1,0:T(1,128)}', space=vmem, size = 0x9000, scoped, tag = 'internal scratch']
  #allocation2 [shape = 'f32[36,384]{1,0:T(8,128)}', space=vmem, size = 0xf000, scoped, tag = 'scratch operand']
  %s0 = inlined_call_operand.vmem [shape: f32[2,4,512], index: 0, kind: input, shape index: {}]
  %s1 = inlined_call_operand.vmem [shape: f32[8,36], index: 1, kind: input, shape index: {}]
  %s2 = inlined_call_operand.vmem [shape: f32[8,1], index: 2, kind: input, shape index: {}]
  %s3 = inlined_call_operand.vmem [shape: f32[8,1], index: 3, kind: input, shape index: {}]
  %s4 = inlined_call_operand.vmem [shape: f32[2,8,384], index: 4, kind: output, shape index: {}]
  %s5 = sld [smem:[#allocation0]]
  $region49: #{_lambda_.1} parent=0
    _
  %s7 = ssub.s32 1, %s5
  %s8 = scalar_select 0, %s7, %s5
  loop: start=0, step=1, limit=4
  $region2: #{_lambda_.1} parent=0 // loop_pre_header
    _
  $region3: #{_lambda_.1} parent=0 // loop_header
    %s10 = sphi 0, %s14
    %p11 = scmp.ge.s32.totalorder %s10, 4
    %s17 = sphi 0, %s29
    %s18 = sphi 0, %s25
    %s19 = sphi 0, %s17
    %s20 = sphi 0, %s18
    %s21 = sphi 0, %s19
    %s22 = sphi 0, %s20
    %s34 = sphi 0, %s36
    %s37 = sphi 0, %s34
    %s38 = sphi 0, %s37
    %s54 = sphi 0, %s38
    %s58 = sphi 0, %s58
    %s60 = sphi 0, %s58
    %s61 = sphi 0, %s60
    %s75 = sphi 0, %s61
    %s79 = sphi 0, %s79
    %s81 = sphi 0, %s79
    %s82 = sphi 0, %s81
    %s96 = sphi 0, %s82
    %s100 = sphi 0, %s100
    %s102 = sphi 0, %s100
    %s103 = sphi 0, %s102
    %s117 = sphi 0, %s103
    %s125 = sphi 0, %s127
    %s128 = sphi 0, %s125
    %s129 = sphi 0, %s128
    %s145 = sphi 0, %s129
  $region4: #{_lambda_.1} parent=0 // loop_header_branch
    %13 = sbr.rel (%p11) target = $region8
  $region5: #{_lambda_.1} parent=0 // loop_body
    %s15 = ssub.s32 %s10, 1
    %s16 = ssub.s32 %s10, 2
    %s23 = sadd.s32 1, %s18
    %p24 = scmp.ge.s32.totalorder %s23, 1
    %s25 = scalar_select %p24, 0, %s23
    %s26 = sadd.s32 1, %s17
    %s27 = scalar_select %p24, %s26, %s17
    %p28 = scmp.ge.s32.totalorder %s27, 2
    %s29 = scalar_select %p28, 0, %s27
    %s30 = ssub.s32 %s17, %s29
    %s31 = ssub.s32 %s18, %s25
    %s32 = sor.u32 %s30, %s31
    %p33 = scmp.eq.s32.totalorder %s32, 0
    %s35 = sadd.s32 %s34, 1
    %s36 = scalar_select %p33, %s34, %s35
    %p39 = pneg %p33
    %p40 = scmp.eq.s32.totalorder %s10, 1
    %p41 = por %p39, %p40
    %p42 = scmp.ne.s32.totalorder %s34, %s37
    %p43 = scmp.eq.s32.totalorder %s10, 0
    %p44 = por %p42, %p43
    %p45 = scmp.ne.s32.totalorder %s34, %s37
    %p46 = scmp.eq.s32.totalorder %s15, 1
    %p47 = por %p45, %p46
    %p48 = scmp.ne.s32.totalorder %s37, %s38
    %p49 = scmp.eq.s32.totalorder %s15, 0
    %p50 = por %p48, %p49
    %p51 = scmp.ne.s32.totalorder %s37, %s38
    %p52 = scmp.eq.s32.totalorder %s16, 1
    %p53 = por %p51, %p52
    %p55 = scmp.ne.s32.totalorder %s38, %s54
    %p56 = scmp.eq.s32.totalorder %s16, 0
    %p57 = por %p55, %p56
    %s59 = sadd.s32 %s58, 1
    %p62 = scmp.eq.s32.totalorder %s10, 1
    %p63 = scmp.ne.s32.totalorder %s58, %s60
    %p64 = scmp.eq.s32.totalorder %s10, 0
    %p65 = por %p63, %p64
    %p66 = scmp.ne.s32.totalorder %s58, %s60
    %p67 = scmp.eq.s32.totalorder %s15, 1
    %p68 = por %p66, %p67
    %p69 = scmp.ne.s32.totalorder %s60, %s61
    %p70 = scmp.eq.s32.totalorder %s15, 0
    %p71 = por %p69, %p70
    %p72 = scmp.ne.s32.totalorder %s60, %s61
    %p73 = scmp.eq.s32.totalorder %s16, 1
    %p74 = por %p72, %p73
    %p76 = scmp.ne.s32.totalorder %s61, %s75
    %p77 = scmp.eq.s32.totalorder %s16, 0
    %p78 = por %p76, %p77
    %s80 = sadd.s32 %s79, 1
    %p83 = scmp.eq.s32.totalorder %s10, 1
    %p84 = scmp.ne.s32.totalorder %s79, %s81
    %p85 = scmp.eq.s32.totalorder %s10, 0
    %p86 = por %p84, %p85
    %p87 = scmp.ne.s32.totalorder %s79, %s81
    %p88 = scmp.eq.s32.totalorder %s15, 1
    %p89 = por %p87, %p88
    %p90 = scmp.ne.s32.totalorder %s81, %s82
    %p91 = scmp.eq.s32.totalorder %s15, 0
    %p92 = por %p90, %p91
    %p93 = scmp.ne.s32.totalorder %s81, %s82
    %p94 = scmp.eq.s32.totalorder %s16, 1
    %p95 = por %p93, %p94
    %p97 = scmp.ne.s32.totalorder %s82, %s96
    %p98 = scmp.eq.s32.totalorder %s16, 0
    %p99 = por %p97, %p98
    %s101 = sadd.s32 %s100, 1
    %p104 = scmp.eq.s32.totalorder %s10, 1
    %p105 = scmp.ne.s32.totalorder %s100, %s102
    %p106 = scmp.eq.s32.totalorder %s10, 0
    %p107 = por %p105, %p106
    %p108 = scmp.ne.s32.totalorder %s100, %s102
    %p109 = scmp.eq.s32.totalorder %s15, 1
    %p110 = por %p108, %p109
    %p111 = scmp.ne.s32.totalorder %s102, %s103
    %p112 = scmp.eq.s32.totalorder %s15, 0
    %p113 = por %p111, %p112
    %p114 = scmp.ne.s32.totalorder %s102, %s103
    %p115 = scmp.eq.s32.totalorder %s16, 1
    %p116 = por %p114, %p115
    %p118 = scmp.ne.s32.totalorder %s103, %s117
    %p119 = scmp.eq.s32.totalorder %s16, 0
    %p120 = por %p118, %p119
    %s121 = ssub.s32 %s17, %s29
    %s122 = ssub.s32 %s18, %s25
    %s123 = sor.u32 %s121, %s122
    %p124 = scmp.eq.s32.totalorder %s123, 0
    %s126 = sadd.s32 %s125, 1
    %s127 = scalar_select %p124, %s125, %s126
    %p130 = pneg %p124
    %p131 = scmp.eq.s32.totalorder %s10, 1
    %p132 = por %p130, %p131
    %p133 = scmp.ne.s32.totalorder %s125, %s128
    %p134 = scmp.eq.s32.totalorder %s10, 0
    %p135 = por %p133, %p134
    %p136 = scmp.ne.s32.totalorder %s125, %s128
    %p137 = scmp.eq.s32.totalorder %s15, 1
    %p138 = por %p136, %p137
    %p139 = scmp.ne.s32.totalorder %s128, %s129
    %p140 = scmp.eq.s32.totalorder %s15, 0
    %p141 = por %p139, %p140
    %p142 = scmp.ne.s32.totalorder %s128, %s129
    %p143 = scmp.eq.s32.totalorder %s16, 1
    %p144 = por %p142, %p143
    %p146 = scmp.ne.s32.totalorder %s129, %s145
    %p147 = scmp.eq.s32.totalorder %s16, 0
    %p148 = por %p146, %p147
    %p149 = scmp.le.s32.totalorder 1, %s10
    %p150 = scmp.lt.s32.totalorder %s10, 3
    %p151 = pnand %p149, %p150
    %p152 = pneg %p151
    // Predicated region
    $region9: #{_lambda_.1} parent=5 // pred_check
      _
    $region10: #{_lambda_.1} parent=5 // pred_check_branch
      %154 = sbr.rel (%p151) target = $region12
    $region11: #{_lambda_.1} parent=5 // pred_region
      %s155 = ssub.s32 %s10, 1
      // Predicated region
      $region13: #{_lambda_.1} parent=11 // pred_check
        %p156 = pneg %p71
      $region14: #{_lambda_.1} parent=11 // pred_check_branch
        %158 = sbr.rel (%p156) target = $region16
      $region15: #{_lambda_.1} parent=11 // pred_region
        _
      $region16: #{_lambda_.1} parent=11 // pred_fallthru
        _
      // Predicated region
      $region17: #{_lambda_.1} parent=11 // pred_check
        %p159 = pneg %p92
      $region18: #{_lambda_.1} parent=11 // pred_check_branch
        %161 = sbr.rel (%p159) target = $region20
      $region19: #{_lambda_.1} parent=11 // pred_region
        _
      $region20: #{_lambda_.1} parent=11 // pred_fallthru
        _
      // Predicated region
      $region21: #{_lambda_.1} parent=11 // pred_check
        %p162 = pneg %p113
      $region22: #{_lambda_.1} parent=11 // pred_check_branch
        %164 = sbr.rel (%p162) target = $region24
      $region23: #{_lambda_.1} parent=11 // pred_region
        _
      $region24: #{_lambda_.1} parent=11 // pred_fallthru
        _
    $region12: #{_lambda_.1} parent=5 // pred_fallthru
      _
    %p165 = scmp.lt.s32.totalorder %s10, 2
    // Predicated region
    $region25: #{_lambda_.1} parent=5 // pred_check
      %p166 = pneg %p165
    $region26: #{_lambda_.1} parent=5 // pred_check_branch
      %168 = sbr.rel (%p166) target = $region28
    $region27: #{_lambda_.1} parent=5 // pred_region
      // Predicated region
      $region29: #{_lambda_.1} parent=27 // pred_check
        %p169 = pneg %p44
      $region30: #{_lambda_.1} parent=27 // pred_check_branch
        %171 = sbr.rel (%p169) target = $region32
      $region31: #{_lambda_.1} parent=27 // pred_region
        %s172 = smul.u32 4, %s18
        %p173 = scmp.lt.s32.totalorder %s17, 1
        %s174 = scalar_select %p173, %s17, 1
        %p175 = scmp.lt.s32.totalorder %s172, 3
        %s176 = scalar_select %p175, %s172, 3
        %s177 = smul.addr %s174, 4
        %s178 = sadd.s32 %s176, %s177
        %s179 = smul.addr %s178, 4
        %s180 = scalar_lea.vmem %s0, %s179
        %s181 = smul.u32 4, %s18
      $region32: #{_lambda_.1} parent=27 // pred_fallthru
        _
    $region28: #{_lambda_.1} parent=5 // pred_fallthru
      _
    %p182 = scmp.le.s32.totalorder 1, %s10
    %p183 = scmp.lt.s32.totalorder %s10, 3
    %p184 = pnand %p182, %p183
    %p185 = pneg %p184
    // Predicated region
    $region33: #{_lambda_.1} parent=5 // pred_check
      _
    $region34: #{_lambda_.1} parent=5 // pred_check_branch
      %187 = sbr.rel (%p184) target = $region36
    $region35: #{_lambda_.1} parent=5 // pred_region
      %s188 = ssub.s32 %s10, 1
      %s189 = smul.u32 4, %s20
      %p190 = scmp.lt.s32.totalorder %s19, 1
      %s191 = scalar_select %p190, %s19, 1
      %p192 = scmp.lt.s32.totalorder %s189, 3
      %s193 = scalar_select %p192, %s189, 3
      %s194 = smul.addr %s191, 4
      %s195 = sadd.s32 %s193, %s194
      %s196 = smul.addr %s195, 4
      %s197 = scalar_lea.vmem %s0, %s196
      %p198 = pneg %p50
      %p199 = pneg %p47
      %p200 = pneg %p71
      %p201 = pneg %p68
      %p202 = pneg %p92
      %p203 = pneg %p89
      %p204 = pneg %p113
      %p205 = pneg %p110
      %p206 = pneg %p141
      %p207 = pneg %p138
      %s208 = smul.u32 3, %s20
      %p209 = scmp.lt.s32.totalorder %s19, 1
      %s210 = scalar_select %p209, %s19, 1
      %p211 = scmp.lt.s32.totalorder %s208, 2
      %s212 = scalar_select %p211, %s208, 2
      %s213 = smul.addr %s210, 3
      %s214 = sadd.s32 %s212, %s213
      %s215 = smul.addr %s214, 8
      %s216 = scalar_lea.vmem %s4, %s215
      %s217 = smul.u32 4, %s20
      %p218 = scmp.lt.s32.totalorder %s19, 1
      %s219 = scalar_select %p218, %s19, 1
      %p220 = scmp.lt.s32.totalorder %s217, 3
      %s221 = scalar_select %p220, %s217, 3
      %s222 = smul.addr %s219, 4
      %s223 = sadd.s32 %s221, %s222
      %s224 = smul.addr %s223, 4
      %s225 = scalar_lea.vmem %s0, %s224
      %s226 = smul.u32 4, %s20
      %s227 = smul.u32 3, %s20
      %p228 = scmp.lt.s32.totalorder %s19, 1
      %s229 = scalar_select %p228, %s19, 1
      %p230 = scmp.lt.s32.totalorder %s227, 2
      %s231 = scalar_select %p230, %s227, 2
      %s232 = smul.addr %s229, 3
      %s233 = sadd.s32 %s231, %s232
      %s234 = smul.addr %s233, 8
      %s235 = scalar_lea.vmem %s4, %s234
      %s236 = smul.u32 3, %s20
      %v237 = vld [vmem:[%s225] sm:$0xff]
      %v238 = vld [vmem:[%s225 + $0x8] sm:$0xf]
      %241 = vst [vmem:[#allocation1] ss:$2 sm:$0xff] %v237
      %s242 = scalar_lea.vmem [#allocation1], 16
      %243 = vst [vmem:[%s242] ss:$2 sm:$0xff] %v238
      %v244 = vld.sshfl [vmem:[#allocation1] sm:$0xff pattern:$0x75316420]
      %v245 = vld.sshfl [vmem:[#allocation1 + $0x8] sm:$0xff pattern:$0x75316420]
      %v246 = vld.sshfl [vmem:[#allocation1 + $0x10] sm:$0xff pattern:$0x75316420]
      %250 = vst [vmem:[#allocation2] sm:$0xf] %v244
      %251 = vst [vmem:[#allocation2 + $0x8] sm:$0xf] %v245
      %252 = vst [vmem:[#allocation2 + $0x10] sm:$0xf] %v246
      %v253 = vld [vmem:[%s225] sm:$0xff]
      %v254 = vld [vmem:[%s225 + $0x8] sm:$0xff]
      %s257 = scalar_lea.vmem [#allocation1], 1
      %258 = vst [vmem:[%s257] ss:$2 sm:$0xff] %v253
      %s259 = scalar_lea.vmem [#allocation1], 17
      %260 = vst [vmem:[%s259] ss:$2 sm:$0xff] %v254
      %v261 = vld.sshfl [vmem:[#allocation1] sm:$0xff pattern:$0x75316420]
      %v262 = vld.sshfl [vmem:[#allocation1 + $0x8] sm:$0xff pattern:$0x75316420]
      %v263 = vld.sshfl [vmem:[#allocation1 + $0x10] sm:$0xff pattern:$0x75316420]
      %v264 = vld.sshfl [vmem:[#allocation1 + $0x18] sm:$0xff pattern:$0x75316420]
      %265 = vrot.lane.b32.xlu0 %v261, 127
      %v266 = vpop.permute.xlu0 %265
      %267 = vrot.lane.b32.xlu0 %v262, 127
      %v268 = vpop.permute.xlu0 %267
      %269 = vrot.lane.b32.xlu0 %v263, 127
      %v270 = vpop.permute.xlu0 %269
      %271 = vrot.lane.b32.xlu0 %v264, 127
      %v272 = vpop.permute.xlu0 %271
      %vm273 = vcmask 1039360
      %v274 = vsel %vm273, %v266, %v268
      %v275 = vsel %vm273, %v268, %v270
      %v276 = vsel %vm273, %v270, %v272
      %280 = vst [vmem:[#allocation2] sm:$0xf0] %v274
      %281 = vst [vmem:[#allocation2 + $0x8] sm:$0xf0] %v275
      %282 = vst [vmem:[#allocation2 + $0x10] sm:$0xf0] %v276
      %v283 = vld [vmem:[%s225] sm:$0xff]
      %v284 = vld [vmem:[%s225 + $0x8] sm:$0xff]
      %287 = vst [vmem:[#allocation1] ss:$2 sm:$0xff] %v283
      %s288 = scalar_lea.vmem [#allocation1], 16
      %289 = vst [vmem:[%s288] ss:$2 sm:$0xff] %v284
      %v290 = vld.sshfl [vmem:[#allocation1] sm:$0xff pattern:$0x75316420]
      %v291 = vld.sshfl [vmem:[#allocation1 + $0x8] sm:$0xff pattern:$0x75316420]
      %v292 = vld.sshfl [vmem:[#allocation1 + $0x10] sm:$0xff pattern:$0x75316420]
      %v293 = vld.sshfl [vmem:[#allocation1 + $0x18] sm:$0xff pattern:$0x75316420]
      %294 = vrot.lane.b32.xlu0 %v290, 126
      %v295 = vpop.permute.xlu0 %294
      %296 = vrot.lane.b32.xlu0 %v291, 126
      %v297 = vpop.permute.xlu0 %296
      %298 = vrot.lane.b32.xlu0 %v292, 126
      %v299 = vpop.permute.xlu0 %298
      %300 = vrot.lane.b32.xlu0 %v293, 126
      %v301 = vpop.permute.xlu0 %300
      %vm302 = vcmask 1031168
      %v303 = vsel %vm302, %v295, %v297
      %v304 = vsel %vm302, %v297, %v299
      %v305 = vsel %vm302, %v299, %v301
      %309 = vst [vmem:[#allocation2 + $0x18] sm:$0xf] %v303
      %310 = vst [vmem:[#allocation2 + $0x20] sm:$0xf] %v304
      %311 = vst [vmem:[#allocation2 + $0x28] sm:$0xf] %v305
      %v312 = vld [vmem:[%s225] sm:$0xff]
      %v313 = vld [vmem:[%s225 + $0x8] sm:$0xff]
      %s316 = scalar_lea.vmem [#allocation1], 1
      %317 = vst [vmem:[%s316] ss:$2 sm:$0xff] %v312
      %s318 = scalar_lea.vmem [#allocation1], 17
      %319 = vst [vmem:[%s318] ss:$2 sm:$0xff] %v313
      %v320 = vld.sshfl [vmem:[#allocation1] sm:$0xff pattern:$0x75316420]
      %v321 = vld.sshfl [vmem:[#allocation1 + $0x8] sm:$0xff pattern:$0x75316420]
      %v322 = vld.sshfl [vmem:[#allocation1 + $0x10] sm:$0xff pattern:$0x75316420]
      %v323 = vld.sshfl [vmem:[#allocation1 + $0x18] sm:$0xff pattern:$0x75316420]
      %324 = vrot.lane.b32.xlu0 %v320, 110
      %v325 = vpop.permute.xlu0 %324
      %326 = vrot.lane.b32.xlu0 %v321, 110
      %v327 = vpop.permute.xlu0 %326
      %328 = vrot.lane.b32.xlu0 %v322, 110
      %v329 = vpop.permute.xlu0 %328
      %330 = vrot.lane.b32.xlu0 %v323, 110
      %v331 = vpop.permute.xlu0 %330
      %vm332 = vcmask 900096
      %v333 = vsel %vm332, %v325, %v327
      %v334 = vsel %vm332, %v327, %v329
      %v335 = vsel %vm332, %v329, %v331
      %339 = vst [vmem:[#allocation2 + $0x18] sm:$0xf0] %v333
      %340 = vst [vmem:[#allocation2 + $0x20] sm:$0xf0] %v334
      %341 = vst [vmem:[#allocation2 + $0x28] sm:$0xf0] %v335
      %v342 = vld [vmem:[%s225] sm:$0xff]
      %v343 = vld [vmem:[%s225 + $0x8] sm:$0xff]
      %346 = vst [vmem:[#allocation1] ss:$2 sm:$0xff] %v342
      %s347 = scalar_lea.vmem [#allocation1], 16
      %348 = vst [vmem:[%s347] ss:$2 sm:$0xff] %v343
      %v349 = vld.sshfl [vmem:[#allocation1] sm:$0xff pattern:$0x75316420]
      %v350 = vld.sshfl [vmem:[#allocation1 + $0x8] sm:$0xff pattern:$0x75316420]
      %v351 = vld.sshfl [vmem:[#allocation1 + $0x10] sm:$0xff pattern:$0x75316420]
      %v352 = vld.sshfl [vmem:[#allocation1 + $0x18] sm:$0xff pattern:$0x75316420]
      %353 = vrot.lane.b32.xlu0 %v349, 109
      %v354 = vpop.permute.xlu0 %353
      %355 = vrot.lane.b32.xlu0 %v350, 109
      %v356 = vpop.permute.xlu0 %355
      %357 = vrot.lane.b32.xlu0 %v351, 109
      %v358 = vpop.permute.xlu0 %357
      %359 = vrot.lane.b32.xlu0 %v352, 109
      %v360 = vpop.permute.xlu0 %359
      %vm361 = vcmask 891904
      %v362 = vsel %vm361, %v354, %v356
      %v363 = vsel %vm361, %v356, %v358
      %v364 = vsel %vm361, %v358, %v360
      %368 = vst [vmem:[#allocation2 + $0x30] sm:$0xf] %v362
      %369 = vst [vmem:[#allocation2 + $0x38] sm:$0xf] %v363
      %370 = vst [vmem:[#allocation2 + $0x40] sm:$0xf] %v364
      %v371 = vld [vmem:[%s225] sm:$0xff]
      %v372 = vld [vmem:[%s225 + $0x8] sm:$0xff]
      %s375 = scalar_lea.vmem [#allocation1], 1
      %376 = vst [vmem:[%s375] ss:$2 sm:$0xff] %v371
      %s377 = scalar_lea.vmem [#allocation1], 17
      %378 = vst [vmem:[%s377] ss:$2 sm:$0xff] %v372
      %v379 = vld.sshfl [vmem:[#allocation1] sm:$0xff pattern:$0x75316420]
      %v380 = vld.sshfl [vmem:[#allocation1 + $0x8] sm:$0xff pattern:$0x75316420]
      %v381 = vld.sshfl [vmem:[#allocation1 + $0x10] sm:$0xff pattern:$0x75316420]
      %v382 = vld.sshfl [vmem:[#allocation1 + $0x18] sm:$0xff pattern:$0x75316420]
      %383 = vrot.lane.b32.xlu0 %v379, 108
      %v384 = vpop.permute.xlu0 %383
      %385 = vrot.lane.b32.xlu0 %v380, 108
      %v386 = vpop.permute.xlu0 %385
      %387 = vrot.lane.b32.xlu0 %v381, 108
      %v388 = vpop.permute.xlu0 %387
      %389 = vrot.lane.b32.xlu0 %v382, 108
      %v390 = vpop.permute.xlu0 %389
      %vm391 = vcmask 883712
      %v392 = vsel %vm391, %v384, %v386
      %v393 = vsel %vm391, %v386, %v388
      %v394 = vsel %vm391, %v388, %v390
      %398 = vst [vmem:[#allocation2 + $0x30] sm:$0xf0] %v392
      %399 = vst [vmem:[#allocation2 + $0x38] sm:$0xf0] %v393
      %400 = vst [vmem:[#allocation2 + $0x40] sm:$0xf0] %v394
      %v401 = vld [vmem:[%s225] sm:$0xff]
      %v402 = vld [vmem:[%s225 + $0x8] sm:$0xff]
      %405 = vst [vmem:[#allocation1] ss:$2 sm:$0xff] %v401
      %s406 = scalar_lea.vmem [#allocation1], 16
      %407 = vst [vmem:[%s406] ss:$2 sm:$0xff] %v402
      %v408 = vld.sshfl [vmem:[#allocation1] sm:$0xff pattern:$0x75316420]
      %v409 = vld.sshfl [vmem:[#allocation1 + $0x8] sm:$0xff pattern:$0x75316420]
      %v410 = vld.sshfl [vmem:[#allocation1 + $0x10] sm:$0xff pattern:$0x75316420]
      %v411 = vld.sshfl [vmem:[#allocation1 + $0x18] sm:$0xff pattern:$0x75316420]
      %412 = vrot.lane.b32.xlu0 %v408, 92
      %v413 = vpop.permute.xlu0 %412
      %414 = vrot.lane.b32.xlu0 %v409, 92
      %v415 = vpop.permute.xlu0 %414
      %416 = vrot.lane.b32.xlu0 %v410, 92
      %v417 = vpop.permute.xlu0 %416
      %418 = vrot.lane.b32.xlu0 %v411, 92
      %v419 = vpop.permute.xlu0 %418
      %vm420 = vcmask 752640
      %v421 = vsel %vm420, %v413, %v415
      %v422 = vsel %vm420, %v415, %v417
      %v423 = vsel %vm420, %v417, %v419
      %427 = vst [vmem:[#allocation2 + $0x48] sm:$0xf] %v421
      %428 = vst [vmem:[#allocation2 + $0x50] sm:$0xf] %v422
      %429 = vst [vmem:[#allocation2 + $0x58] sm:$0xf] %v423
      %v430 = vld [vmem:[%s225] sm:$0xff]
      %v431 = vld [vmem:[%s225 + $0x8] sm:$0xff]
      %s434 = scalar_lea.vmem [#allocation1], 1
      %435 = vst [vmem:[%s434] ss:$2 sm:$0xff] %v430
      %s436 = scalar_lea.vmem [#allocation1], 17
      %437 = vst [vmem:[%s436] ss:$2 sm:$0xff] %v431
      %v438 = vld.sshfl [vmem:[#allocation1] sm:$0xff pattern:$0x75316420]
      %v439 = vld.sshfl [vmem:[#allocation1 + $0x8] sm:$0xff pattern:$0x75316420]
      %v440 = vld.sshfl [vmem:[#allocation1 + $0x10] sm:$0xff pattern:$0x75316420]
      %v441 = vld.sshfl [vmem:[#allocation1 + $0x18] sm:$0xff pattern:$0x75316420]
      %442 = vrot.lane.b32.xlu0 %v438, 91
      %v443 = vpop.permute.xlu0 %442
      %444 = vrot.lane.b32.xlu0 %v439, 91
      %v445 = vpop.permute.xlu0 %444
      %446 = vrot.lane.b32.xlu0 %v440, 91
      %v447 = vpop.permute.xlu0 %446
      %448 = vrot.lane.b32.xlu0 %v441, 91
      %v449 = vpop.permute.xlu0 %448
      %vm450 = vcmask 744448
      %v451 = vsel %vm450, %v443, %v445
      %v452 = vsel %vm450, %v445, %v447
      %v453 = vsel %vm450, %v447, %v449
      %457 = vst [vmem:[#allocation2 + $0x48] sm:$0xf0] %v451
      %458 = vst [vmem:[#allocation2 + $0x50] sm:$0xf0] %v452
      %459 = vst [vmem:[#allocation2 + $0x58] sm:$0xf0] %v453
      %v460 = vld [vmem:[%s225] sm:$0xff]
      %v461 = vld [vmem:[%s225 + $0x8] sm:$0xff]
      %464 = vst [vmem:[#allocation1] ss:$2 sm:$0xff] %v460
      %s465 = scalar_lea.vmem [#allocation1], 16
      %466 = vst [vmem:[%s465] ss:$2 sm:$0xff] %v461
      %v467 = vld.sshfl [vmem:[#allocation1] sm:$0xff pattern:$0x75316420]
      %v468 = vld.sshfl [vmem:[#allocation1 + $0x8] sm:$0xff pattern:$0x75316420]
      %v469 = vld.sshfl [vmem:[#allocation1 + $0x10] sm:$0xff pattern:$0x75316420]
      %v470 = vld.sshfl [vmem:[#allocation1 + $0x18] sm:$0xff pattern:$0x75316420]
      %471 = vrot.lane.b32.xlu0 %v467, 90
      %v472 = vpop.permute.xlu0 %471
      %473 = vrot.lane.b32.xlu0 %v468, 90
      %v474 = vpop.permute.xlu0 %473
      %475 = vrot.lane.b32.xlu0 %v469, 90
      %v476 = vpop.permute.xlu0 %475
      %477 = vrot.lane.b32.xlu0 %v470, 90
      %v478 = vpop.permute.xlu0 %477
      %vm479 = vcmask 736256
      %v480 = vsel %vm479, %v472, %v474
      %v481 = vsel %vm479, %v474, %v476
      %v482 = vsel %vm479, %v476, %v478
      %486 = vst [vmem:[#allocation2 + $0x60] sm:$0xf] %v480
      %487 = vst [vmem:[#allocation2 + $0x68] sm:$0xf] %v481
      %488 = vst [vmem:[#allocation2 + $0x70] sm:$0xf] %v482
      %v489 = vld [vmem:[%s1] sm:$0xff]
      %v490 = vld [vmem:[#allocation2] sm:$0xff]
      %v491 = vld [vmem:[#allocation2 + $0x8] sm:$0xff]
      %v492 = vld [vmem:[#allocation2 + $0x10] sm:$0xff]
      %v493 = vld [vmem:[#allocation2 + $0x18] sm:$0xff]
      %v494 = vld [vmem:[#allocation2 + $0x20] sm:$0xff]
      %v495 = vld [vmem:[#allocation2 + $0x28] sm:$0xff]
      %v496 = vld [vmem:[#allocation2 + $0x30] sm:$0xff]
      %v497 = vld [vmem:[#allocation2 + $0x38] sm:$0xff]
      %v498 = vld [vmem:[#allocation2 + $0x40] sm:$0xff]
      %v499 = vld [vmem:[#allocation2 + $0x48] sm:$0xff]
      %v500 = vld [vmem:[#allocation2 + $0x50] sm:$0xff]
      %v501 = vld [vmem:[#allocation2 + $0x58] sm:$0xff]
      %v502 = vld [vmem:[#allocation2 + $0x60] sm:$0xf]
      %v503 = vld [vmem:[#allocation2 + $0x68] sm:$0xf]
      %v504 = vld [vmem:[#allocation2 + $0x70] sm:$0xf]
      %vm505 = vcmask 293888
      %v507 = vsel %vm505, %v489, 0
      %vm509 = vcmask 1043456
      %v511 = vsel %vm509, %v502, 0
      %v514 = vsel %vm509, %v503, 0
      %v517 = vsel %vm509, %v504, 0
      %519 = vmatpush.msra.mxu0 0.0
      %520 = vmatpush.msra.mxu0 0.0
      %521 = vmatpush.msra.mxu0 0.0
      %522 = vmatpush.msra.mxu0 0.0
      %523 = vmatpush.msra.mxu0 0.0
      %524 = vmatpush.msra.mxu0 0.0
      %525 = vmatpush.msra.mxu0 0.0
      %526 = vmatpush.msra.mxu0 0.0
      %527 = vmatpush.msra.mxu0 0.0
      %528 = vmatpush.msra.mxu0 0.0
      %529 = vmatpush.msra.mxu0 0.0
      %530 = vmatpush.msra.mxu0 %v511
      %531 = vmatpush.msra.mxu0 %v499
      %532 = vmatpush.msra.mxu0 %v496
      %533 = vmatpush.msra.mxu0 %v493
      %534 = vmatpush.msra.mxu0 %v490
      %535 = vmatmul.f32.gmra.mxu0 %v507
      %v536 = vpop.f32.mrf.mxu0
      %v537 = vadd.f32 0.0, %v536
      %538 = vdwg.mxu0
      %539 = vmatpush.msra.mxu0 0.0
      %540 = vmatpush.msra.mxu0 0.0
      %541 = vmatpush.msra.mxu0 0.0
      %542 = vmatpush.msra.mxu0 0.0
      %543 = vmatpush.msra.mxu0 0.0
      %544 = vmatpush.msra.mxu0 0.0
      %545 = vmatpush.msra.mxu0 0.0
      %546 = vmatpush.msra.mxu0 0.0
      %547 = vmatpush.msra.mxu0 0.0
      %548 = vmatpush.msra.mxu0 0.0
      %549 = vmatpush.msra.mxu0 0.0
      %550 = vmatpush.msra.mxu0 %v514
      %551 = vmatpush.msra.mxu0 %v500
      %552 = vmatpush.msra.mxu0 %v497
      %553 = vmatpush.msra.mxu0 %v494
      %554 = vmatpush.msra.mxu0 %v491
      %555 = vmatmul.f32.gmra.mxu0 %v507
      %v556 = vpop.f32.mrf.mxu0
      %v557 = vadd.f32 0.0, %v556
      %558 = vdwg.mxu0
      %559 = vmatpush.msra.mxu0 0.0
      %560 = vmatpush.msra.mxu0 0.0
      %561 = vmatpush.msra.mxu0 0.0
      %562 = vmatpush.msra.mxu0 0.0
      %563 = vmatpush.msra.mxu0 0.0
      %564 = vmatpush.msra.mxu0 0.0
      %565 = vmatpush.msra.mxu0 0.0
      %566 = vmatpush.msra.mxu0 0.0
      %567 = vmatpush.msra.mxu0 0.0
      %568 = vmatpush.msra.mxu0 0.0
      %569 = vmatpush.msra.mxu0 0.0
      %570 = vmatpush.msra.mxu0 %v517
      %571 = vmatpush.msra.mxu0 %v501
      %572 = vmatpush.msra.mxu0 %v498
      %573 = vmatpush.msra.mxu0 %v495
      %574 = vmatpush.msra.mxu0 %v492
      %575 = vmatmul.f32.gmra.mxu0 %v507
      %v576 = vpop.f32.mrf.mxu0
      %v577 = vadd.f32 0.0, %v576
      %578 = vdwg.mxu0
      %v579 = vld [vmem:[%s2] sm:$0xff]
      %581 = vset.pattern.permute.xlu0 0
      %582 = vperm.xlu0 %581, %v579
      %v583 = vpop.permute.xlu0 %582
      %v585 = vmul.f32 %v537, %v583
      %v586 = vmul.f32 %v557, %v583
      %v587 = vmul.f32 %v577, %v583
      %v588 = vld [vmem:[%s3] sm:$0xff]
      %590 = vset.pattern.permute.xlu0 0
      %591 = vperm.xlu0 %590, %v588
      %v592 = vpop.permute.xlu0 %591
      %v594 = vadd.f32 %v585, %v592
      %v595 = vadd.f32 %v586, %v592
      %v596 = vadd.f32 %v587, %v592
      %v597 = vmax.f32 %v594, 0.0
      %v598 = vmax.f32 %v595, 0.0
      %v599 = vmax.f32 %v596, 0.0
      %600 = vst [vmem:[%s235] sm:$0xff] %v597
      %601 = vst [vmem:[%s235 + $0x8] sm:$0xff] %v598
      %602 = vst [vmem:[%s235 + $0x10] sm:$0xff] %v599
      %s603 = smul.u32 3, %s20
      %p604 = scmp.lt.s32.totalorder %s19, 1
      %s605 = scalar_select %p604, %s19, 1
      %p606 = scmp.lt.s32.totalorder %s603, 2
      %s607 = scalar_select %p606, %s603, 2
      %s608 = smul.addr %s605, 3
      %s609 = sadd.s32 %s607, %s608
      %s610 = smul.addr %s609, 8
      %s611 = scalar_lea.vmem %s4, %s610
      // Predicated region
      $region37: #{_lambda_.1} parent=35 // pred_check
        %p612 = pneg %p138
      $region38: #{_lambda_.1} parent=35 // pred_check_branch
        %614 = sbr.rel (%p612) target = $region40
      $region39: #{_lambda_.1} parent=35 // pred_region
        %s615 = smul.u32 3, %s20
      $region40: #{_lambda_.1} parent=35 // pred_fallthru
        _
    $region36: #{_lambda_.1} parent=5 // pred_fallthru
      _
    %p616 = scmp.le.s32.totalorder 2, %s10
    // Predicated region
    $region41: #{_lambda_.1} parent=5 // pred_check
      %p617 = pneg %p616
    $region42: #{_lambda_.1} parent=5 // pred_check_branch
      %619 = sbr.rel (%p617) target = $region44
    $region43: #{_lambda_.1} parent=5 // pred_region
      %s620 = ssub.s32 %s10, 2
      // Predicated region
      $region45: #{_lambda_.1} parent=43 // pred_check
        %p621 = pneg %p144
      $region46: #{_lambda_.1} parent=43 // pred_check_branch
        %623 = sbr.rel (%p621) target = $region48
      $region47: #{_lambda_.1} parent=43 // pred_region
        %s624 = smul.u32 3, %s22
        %p625 = scmp.lt.s32.totalorder %s21, 1
        %s626 = scalar_select %p625, %s21, 1
        %p627 = scmp.lt.s32.totalorder %s624, 2
        %s628 = scalar_select %p627, %s624, 2
        %s629 = smul.addr %s626, 3
        %s630 = sadd.s32 %s628, %s629
        %s631 = smul.addr %s630, 8
        %s632 = scalar_lea.vmem %s4, %s631
      $region48: #{_lambda_.1} parent=43 // pred_fallthru
        _
    $region44: #{_lambda_.1} parent=5 // pred_fallthru
      _
  $region6: #{_lambda_.1} parent=0 // loop_footer
    %s14 = sadd.s32 1, %s10
  $region7: #{_lambda_.1} parent=0 // loop_footer_branch
    %9 = sbr.rel target = $region3
  $region8: #{_lambda_.1} parent=0 // loop_exit
    _

</llo_original>
